<compile_context>
chip_gen: v7x
topology: tpu7x:2x2x1
jax: 0.10.0
libtpu: 0.0.40
codegen_flags: <defaults>
</compile_context>

<pallas_src>
import functools

import numpy as np
import jax
import jax.numpy as jnp
from jax import lax
from jax.experimental import pallas as pl
from jax.experimental.pallas import tpu as pltpu

# ----------------------------------------------------------------------------
# Module configuration (defaults of HeightToNormal)
# ----------------------------------------------------------------------------
FILTER_TYPE = "sobel"
STRENGTH = 1.0
INVERT_X = False
INVERT_Y = False
INVERT_HEIGHT = False
BLUR_KSIZE = 5
BLUR_SIGMA = 1.0          # deterministic stand-in (see TODO above)
NORM_EPS = 1e-12          # F.normalize default eps


def _gaussian_kernel_1d(ksize: int, sigma: float) -> np.ndarray:
    # Matches torchvision.transforms.functional.gaussian_blur kernel build.
    x = np.linspace(-(ksize - 1) * 0.5, (ksize - 1) * 0.5, ksize)
    pdf = np.exp(-0.5 * (x / sigma) ** 2)
    return (pdf / pdf.sum()).astype(np.float32)


_GAUSS_1D = [float(v) for v in _gaussian_kernel_1d(BLUR_KSIZE, BLUR_SIGMA)]

# Separable derivative filters: kx = smooth^T (rows) x [1,0,-1] (cols),
#                               ky = [1,0,-1]^T (rows) x smooth (cols).
if FILTER_TYPE == "sobel":
    _SMOOTH = (1.0, 2.0, 1.0)
elif FILTER_TYPE == "scharr":
    _SMOOTH = (47.0 / 255.0, 162.0 / 255.0, 47.0 / 255.0)
else:
    raise ValueError(f"Filter type {FILTER_TYPE} not supported.")


def _filter_kernels_2d(filter_type):
    # 2-D kernels, used only by the pure-JAX reference.
    if filter_type == "sobel":
        kx = np.array([[1.0, 0.0, -1.0], [2.0, 0.0, -2.0], [1.0, 0.0, -1.0]],
                      dtype=np.float32)
        ky = np.array([[1.0, 2.0, 1.0], [0.0, 0.0, 0.0], [-1.0, -2.0, -1.0]],
                      dtype=np.float32)
    else:  # scharr
        kx = np.array([[47.0, 0.0, -47.0], [162.0, 0.0, -162.0],
                       [47.0, 0.0, -47.0]], dtype=np.float32) / 255.0
        ky = np.array([[47.0, 162.0, 47.0], [0.0, 0.0, 0.0],
                       [-47.0, -162.0, -47.0]], dtype=np.float32) / 255.0
    return kx, ky


# ----------------------------------------------------------------------------
# Pallas kernel
# ----------------------------------------------------------------------------
def _h2n_kernel(in_ref, out_ref, *, th, h, w, w_out):
    # in_ref : (bt, 1, th+6, wp)  halo'd slab of the reflect-padded height.
    #          slab row k  <->  padded-height row (r0 + k), where padded rows
    #          1..H+4 hold the reflect-padded image and rows 0 / H+5 are dummy
    #          zeros; col 0 is a dummy zero column, lane dim padded to wp.
    # out_ref: (bt, 3, th, w_out) lane-dense output tile.
    g = _GAUSS_1D
    s0, s1, s2 = _SMOOTH

    r0 = pl.program_id(1) * th               # first output row of this tile

    slab = in_ref[:, 0]                      # (bt, th+6, wp)

    # --- 1. separable 5x5 Gaussian blur (5 + 5 taps) -------------------------
    # vertical pass (sublane-offset, lane-aligned full-width slices):
    #   vb row k  <->  blurred-image row (r0 - 1 + k)
    vb = g[0] * slab[:, 0:th + 2, :]
    for a in range(1, BLUR_KSIZE):
        vb = vb + g[a] * slab[:, a:a + th + 2, :]
    # horizontal pass:  hb col c  <->  blurred-image col (c - 1)
    hb = g[0] * vb[:, :, 0:w_out + 2]
    for b in range(1, BLUR_KSIZE):
        hb = hb + g[b] * vb[:, :, b:b + w_out + 2]

    # --- 2. pre_process inversion, folded after the blur ---------------------
    img = hb if INVERT_HEIGHT else (1.0 - hb)          # (bt, th+2, w_out+2)

    # --- 3a. zero-padding masks for conv2d(padding=1) (no pad scratch) -------
    # img row k -> blurred row (r0 - 1 + k), valid in [0, h)
    # img col c -> blurred col (c - 1),      valid in [0, w)
    row_id = lax.broadcasted_iota(jnp.int32, (th + 2, 1), 0) + (r0 - 1)
    col_id = lax.broadcasted_iota(jnp.int32, (1, w_out + 2), 1) - 1
    valid = ((row_id >= 0) & (row_id < h)) & ((col_id >= 0) & (col_id < w))
    img = jnp.where(valid[None], img, 0.0)

    # --- 3b. separable sobel/scharr with shared vertical passes --------------
    vs = (s0 * img[:, 0:th, :] + s1 * img[:, 1:th + 1, :]
          + s2 * img[:, 2:th + 2, :])                          # vertical smooth
    vd = img[:, 0:th, :] - img[:, 2:th + 2, :]                 # vertical diff
    gx = vs[:, :, 0:w_out] - vs[:, :, 2:w_out + 2]             # horizontal diff
    gy = (s0 * vd[:, :, 0:w_out] + s1 * vd[:, :, 1:w_out + 1]
          + s2 * vd[:, :, 2:w_out + 2])                        # horizontal smooth

    dx = -gx if INVERT_X else gx
    dy = -gy if INVERT_Y else gy
    dz = 1.0 / STRENGTH                     # scalar; dz plane folded into norm

    # --- 4. F.normalize(dim=1): x / max(||x||, eps) == x * rsqrt(max(s, eps^2))
    ssum = dx * dx + dy * dy + dz * dz
    inv = lax.rsqrt(jnp.maximum(ssum, NORM_EPS * NORM_EPS))    # EUP rsqrt
    out_ref[:, 0] = dx * inv
    out_ref[:, 1] = dy * inv
    out_ref[:, 2] = dz * inv


# ----------------------------------------------------------------------------
# Tile selection (keeps the per-step working set small enough for v7x's VMEM)
# ----------------------------------------------------------------------------
def _choose_tiles(n, h, w_out):
    # Budget in output-plane elements per step (~1 MiB f32 per plane).  With
    # double-buffered input/output blocks plus intermediates the worst-case
    # resident set stays well under the 48 MiB scoped-VMEM limit below.
    budget = 256 * 1024
    if h * w_out <= budget:
        th = h
    else:
        th = 1
        for d in range(1, h):
            if h % d == 0 and d % 8 == 0 and d * w_out <= budget:
                th = max(th, d)
        if th == 1:                 # no suitable multiple-of-8 divisor
            th = h
    bt = 1
    for d in range(1, n + 1):       # pack several small images per step
        if n % d == 0 and d * th * w_out <= budget:
            bt = d
    return bt, th


# ----------------------------------------------------------------------------
# Wrapper (padding + slab construction + pallas_call)
# ----------------------------------------------------------------------------
def height_to_normal(height: jax.Array, *, tile_h=None, batch_tile=None) -> jax.Array:
    """height: (N, 1, H, W) float32  ->  normals: (N, 3, H, W) float32."""
    n, c, h, w = height.shape
    assert c == 1, "HeightToNormal expects a single-channel height map"

    w_out = ((w + 127) // 128) * 128      # lane-dense output width
    wp = w_out + 128                      # padded input width (room for +6 cols)

    bt, th = _choose_tiles(n, h, w_out)
    if tile_h is not None:
        th = tile_h
    if batch_tile is not None:
        bt = batch_tile
    assert n % bt == 0 and h % th == 0
    assert th == h or th % 8 == 0
    nt = h // th

    x = height[:, 0].astype(jnp.float32)                          # (N, H, W)
    # reflect pad by 2 for the 5x5 Gaussian blur (torchvision uses 'reflect')
    p = jnp.pad(x, ((0, 0), (2, 2), (2, 2)), mode="reflect")      # (N, H+4, W+4)
    # +1 dummy row top/bottom (sobel halo rows for boundary tiles, masked in
    # kernel), +1 zero column on the left (keeps every in-kernel column offset
    # non-negative), and pad the lane dim up to wp (multiple of 128).
    p = jnp.pad(p, ((0, 0), (1, 1), (1, wp - (w + 4) - 1)))       # (N, H+6, wp)

    # Overlapping halo'd row slabs so a plain Blocked BlockSpec (and hence the
    # automatic double-buffered pipeline) can feed the kernel.  Duplicates only
    # 6 rows per tile in HBM.
    slabs = jnp.stack([p[:, t * th:t * th + th + 6] for t in range(nt)],
                      axis=1)                                     # (N, nt, th+6, wp)

    kernel = functools.partial(_h2n_kernel, th=th, h=h, w=w, w_out=w_out)

    out = pl.pallas_call(
        kernel,
        out_shape=jax.ShapeDtypeStruct((n, 3, h, w_out), jnp.float32),
        grid=(n // bt, nt),
        in_specs=[pl.BlockSpec((bt, 1, th + 6, wp), lambda i, t: (i, t, 0, 0))],
        out_specs=pl.BlockSpec((bt, 3, th, w_out), lambda i, t: (i, 0, t, 0)),
        compiler_params=pltpu.CompilerParams(
            dimension_semantics=("parallel", "parallel"),
            vmem_limit_bytes=48 * 1024 * 1024,
        ),
    )(slabs)
    return out[..., :w] if w_out != w else out


# ----------------------------------------------------------------------------
# Pure-JAX reference (independent check using lax.conv_general_dilated)
# ----------------------------------------------------------------------------
def _reference(height: jax.Array) -> jax.Array:
    t = height if INVERT_HEIGHT else (1.0 - height)               # (N,1,H,W)
    g1 = jnp.asarray(np.array(_GAUSS_1D, dtype=np.float32))
    g2 = jnp.outer(g1, g1)[None, None]                            # (1,1,5,5)
    tp = jnp.pad(t, ((0, 0), (0, 0), (2, 2), (2, 2)), mode="reflect")
    blurred = jax.lax.conv_general_dilated(
        tp, g2, (1, 1), "VALID", dimension_numbers=("NCHW", "OIHW", "NCHW"))
    kx, ky = _filter_kernels_2d(FILTER_TYPE)
    sk = jnp.stack([jnp.asarray(kx), jnp.asarray(ky)])[:, None]
    g = jax.lax.conv_general_dilated(
        blurred, sk, (1, 1), ((1, 1), (1, 1)),
        dimension_numbers=("NCHW", "OIHW", "NCHW"))
    dx = -g[:, 0] if INVERT_X else g[:, 0]
    dy = -g[:, 1] if INVERT_Y else g[:, 1]
    dz = jnp.ones_like(dx) / STRENGTH
    nrm = jnp.stack([dx, dy, dz], axis=1)
    norm = jnp.maximum(
        jnp.sqrt(jnp.sum(nrm * nrm, axis=1, keepdims=True)), NORM_EPS)
    return nrm / norm


# ----------------------------------------------------------------------------
if __name__ == "__main__":
    key = jax.random.PRNGKey(0)

    # Test 1: required small shape (single tile, images batched per step).
    N, C, H, W = 2, 1, 16, 16
    height = jax.random.uniform(key, (N, C, H, W), dtype=jnp.float32)
    out = jax.block_until_ready(height_to_normal(height))
    ref = jax.block_until_ready(_reference(height))
    assert out.shape == (N, 3, H, W)
    assert jnp.allclose(out, ref, rtol=2e-5, atol=2e-5), (
        f"max abs err = {float(jnp.max(jnp.abs(out - ref)))}")

    # Test 2: exercise the H-tiling / halo-slab / boundary-mask path explicitly.
    N2, H2, W2 = 2, 32, 48
    height2 = jax.random.uniform(jax.random.PRNGKey(0), (N2, 1, H2, W2),
                                 dtype=jnp.float32)
    out2 = jax.block_until_ready(
        height_to_normal(height2, tile_h=8, batch_tile=1))
    ref2 = jax.block_until_ready(_reference(height2))
    assert out2.shape == (N2, 3, H2, W2)
    assert jnp.allclose(out2, ref2, rtol=2e-5, atol=2e-5), (
        f"max abs err (tiled) = {float(jnp.max(jnp.abs(out2 - ref2)))}")

    print("KERNEL_OK")
</pallas_src>

<mosaic_0001>
module attributes {stable_mosaic.version = 11 : i64} {
  func.func @_h2n_kernel(%arg0: i32, %arg1: i32, %arg2: memref<2x1x22x256xf32, #tpu.memory_space<vmem>>, %arg3: memref<2x3x16x128xf32, #tpu.memory_space<vmem>>) attributes {dimension_semantics = [#tpu.dimension_semantics<parallel>, #tpu.dimension_semantics<parallel>], iteration_bounds = array<i64: 1, 1>, scalar_prefetch = 0 : i64, scratch_operands = 0 : i64, tpu.core_type = #tpu.core_type<tc>, window_params = [{transform_indices = @transform_0, window_bounds = array<i64: 2, 1, 22, 256>}, {transform_indices = @transform_1, window_bounds = array<i64: 2, 3, 16, 128>}]} {
    %c16_i32 = arith.constant 16 : i32
    %0 = arith.muli %arg1, %c16_i32 : i32
    %c0 = arith.constant 0 : index
    %c0_0 = arith.constant 0 : index
    %c0_1 = arith.constant 0 : index
    %c0_2 = arith.constant 0 : index
    %1 = vector.load %arg2[%c0, %c0_0, %c0_1, %c0_2] : memref<2x1x22x256xf32, #tpu.memory_space<vmem>>, vector<2x1x22x256xf32>
    %2 = vector.shape_cast %1 : vector<2x1x22x256xf32> to vector<2x22x256xf32>
    %3 = vector.extract_strided_slice %2 {offsets = [0, 0, 0], sizes = [2, 18, 256], strides = [1, 1, 1]} : vector<2x22x256xf32> to vector<2x18x256xf32>
    %cst = arith.constant 0.054488685 : f32
    %4 = vector.broadcast %cst : f32 to vector<2x18x256xf32>
    %5 = arith.mulf %4, %3 : vector<2x18x256xf32>
    %6 = vector.extract_strided_slice %2 {offsets = [0, 1, 0], sizes = [2, 18, 256], strides = [1, 1, 1]} : vector<2x22x256xf32> to vector<2x18x256xf32>
    %cst_3 = arith.constant 0.244201347 : f32
    %7 = vector.broadcast %cst_3 : f32 to vector<2x18x256xf32>
    %8 = arith.mulf %7, %6 : vector<2x18x256xf32>
    %9 = arith.addf %5, %8 : vector<2x18x256xf32>
    %10 = vector.extract_strided_slice %2 {offsets = [0, 2, 0], sizes = [2, 18, 256], strides = [1, 1, 1]} : vector<2x22x256xf32> to vector<2x18x256xf32>
    %cst_4 = arith.constant 0.402619958 : f32
    %11 = vector.broadcast %cst_4 : f32 to vector<2x18x256xf32>
    %12 = arith.mulf %11, %10 : vector<2x18x256xf32>
    %13 = arith.addf %9, %12 : vector<2x18x256xf32>
    %14 = vector.extract_strided_slice %2 {offsets = [0, 3, 0], sizes = [2, 18, 256], strides = [1, 1, 1]} : vector<2x22x256xf32> to vector<2x18x256xf32>
    %cst_5 = arith.constant 0.244201347 : f32
    %15 = vector.broadcast %cst_5 : f32 to vector<2x18x256xf32>
    %16 = arith.mulf %15, %14 : vector<2x18x256xf32>
    %17 = arith.addf %13, %16 : vector<2x18x256xf32>
    %18 = vector.extract_strided_slice %2 {offsets = [0, 4, 0], sizes = [2, 18, 256], strides = [1, 1, 1]} : vector<2x22x256xf32> to vector<2x18x256xf32>
    %cst_6 = arith.constant 0.054488685 : f32
    %19 = vector.broadcast %cst_6 : f32 to vector<2x18x256xf32>
    %20 = arith.mulf %19, %18 : vector<2x18x256xf32>
    %21 = arith.addf %17, %20 : vector<2x18x256xf32>
    %22 = vector.extract_strided_slice %21 {offsets = [0, 0, 0], sizes = [2, 18, 130], strides = [1, 1, 1]} : vector<2x18x256xf32> to vector<2x18x130xf32>
    %cst_7 = arith.constant 0.054488685 : f32
    %23 = vector.broadcast %cst_7 : f32 to vector<2x18x130xf32>
    %24 = arith.mulf %23, %22 : vector<2x18x130xf32>
    %25 = vector.extract_strided_slice %21 {offsets = [0, 0, 1], sizes = [2, 18, 130], strides = [1, 1, 1]} : vector<2x18x256xf32> to vector<2x18x130xf32>
    %cst_8 = arith.constant 0.244201347 : f32
    %26 = vector.broadcast %cst_8 : f32 to vector<2x18x130xf32>
    %27 = arith.mulf %26, %25 : vector<2x18x130xf32>
    %28 = arith.addf %24, %27 : vector<2x18x130xf32>
    %29 = vector.extract_strided_slice %21 {offsets = [0, 0, 2], sizes = [2, 18, 130], strides = [1, 1, 1]} : vector<2x18x256xf32> to vector<2x18x130xf32>
    %cst_9 = arith.constant 0.402619958 : f32
    %30 = vector.broadcast %cst_9 : f32 to vector<2x18x130xf32>
    %31 = arith.mulf %30, %29 : vector<2x18x130xf32>
    %32 = arith.addf %28, %31 : vector<2x18x130xf32>
    %33 = vector.extract_strided_slice %21 {offsets = [0, 0, 3], sizes = [2, 18, 130], strides = [1, 1, 1]} : vector<2x18x256xf32> to vector<2x18x130xf32>
    %cst_10 = arith.constant 0.244201347 : f32
    %34 = vector.broadcast %cst_10 : f32 to vector<2x18x130xf32>
    %35 = arith.mulf %34, %33 : vector<2x18x130xf32>
    %36 = arith.addf %32, %35 : vector<2x18x130xf32>
    %37 = vector.extract_strided_slice %21 {offsets = [0, 0, 4], sizes = [2, 18, 130], strides = [1, 1, 1]} : vector<2x18x256xf32> to vector<2x18x130xf32>
    %cst_11 = arith.constant 0.054488685 : f32
    %38 = vector.broadcast %cst_11 : f32 to vector<2x18x130xf32>
    %39 = arith.mulf %38, %37 : vector<2x18x130xf32>
    %40 = arith.addf %36, %39 : vector<2x18x130xf32>
    %cst_12 = arith.constant 1.000000e+00 : f32
    %41 = vector.broadcast %cst_12 : f32 to vector<2x18x130xf32>
    %42 = arith.subf %41, %40 : vector<2x18x130xf32>
    %43 = tpu.iota {dimensions = array<i32: 0>} : vector<18x1xi32>
    %c1_i32 = arith.constant 1 : i32
    %44 = arith.subi %0, %c1_i32 : i32
    %45 = vector.broadcast %44 : i32 to vector<18x1xi32>
    %46 = arith.addi %43, %45 : vector<18x1xi32>
    %47 = tpu.iota {dimensions = array<i32: 1>} : vector<1x130xi32>
    %c1_i32_13 = arith.constant 1 : i32
    %48 = vector.broadcast %c1_i32_13 : i32 to vector<1x130xi32>
    %49 = arith.subi %47, %48 : vector<1x130xi32>
    %c0_i32 = arith.constant 0 : i32
    %50 = vector.broadcast %c0_i32 : i32 to vector<18x1xi32>
    %51 = arith.cmpi sge, %46, %50 : vector<18x1xi32>
    %c16_i32_14 = arith.constant 16 : i32
    %52 = vector.broadcast %c16_i32_14 : i32 to vector<18x1xi32>
    %53 = arith.cmpi slt, %46, %52 : vector<18x1xi32>
    %54 = arith.andi %51, %53 : vector<18x1xi1>
    %c0_i32_15 = arith.constant 0 : i32
    %55 = vector.broadcast %c0_i32_15 : i32 to vector<1x130xi32>
    %56 = arith.cmpi sge, %49, %55 : vector<1x130xi32>
    %c16_i32_16 = arith.constant 16 : i32
    %57 = vector.broadcast %c16_i32_16 : i32 to vector<1x130xi32>
    %58 = arith.cmpi slt, %49, %57 : vector<1x130xi32>
    %59 = arith.andi %56, %58 : vector<1x130xi1>
    %60 = vector.broadcast %54 : vector<18x1xi1> to vector<18x130xi1>
    %61 = vector.broadcast %59 : vector<1x130xi1> to vector<18x130xi1>
    %62 = arith.andi %60, %61 : vector<18x130xi1>
    %63 = vector.shape_cast %62 : vector<18x130xi1> to vector<1x18x130xi1>
    %cst_17 = arith.constant 0.000000e+00 : f32
    %64 = vector.shape_cast %63 : vector<1x18x130xi1> to vector<1x18x130xi1>
    %65 = vector.broadcast %64 : vector<1x18x130xi1> to vector<2x18x130xi1>
    %66 = vector.broadcast %cst_17 : f32 to vector<2x18x130xf32>
    %67 = arith.select %65, %42, %66 : vector<2x18x130xi1>, vector<2x18x130xf32>
    %68 = vector.extract_strided_slice %67 {offsets = [0, 0, 0], sizes = [2, 16, 130], strides = [1, 1, 1]} : vector<2x18x130xf32> to vector<2x16x130xf32>
    %cst_18 = arith.constant 1.000000e+00 : f32
    %69 = vector.broadcast %cst_18 : f32 to vector<2x16x130xf32>
    %70 = arith.mulf %69, %68 : vector<2x16x130xf32>
    %71 = vector.extract_strided_slice %67 {offsets = [0, 1, 0], sizes = [2, 16, 130], strides = [1, 1, 1]} : vector<2x18x130xf32> to vector<2x16x130xf32>
    %cst_19 = arith.constant 2.000000e+00 : f32
    %72 = vector.broadcast %cst_19 : f32 to vector<2x16x130xf32>
    %73 = arith.mulf %72, %71 : vector<2x16x130xf32>
    %74 = arith.addf %70, %73 : vector<2x16x130xf32>
    %75 = vector.extract_strided_slice %67 {offsets = [0, 2, 0], sizes = [2, 16, 130], strides = [1, 1, 1]} : vector<2x18x130xf32> to vector<2x16x130xf32>
    %cst_20 = arith.constant 1.000000e+00 : f32
    %76 = vector.broadcast %cst_20 : f32 to vector<2x16x130xf32>
    %77 = arith.mulf %76, %75 : vector<2x16x130xf32>
    %78 = arith.addf %74, %77 : vector<2x16x130xf32>
    %79 = vector.extract_strided_slice %67 {offsets = [0, 0, 0], sizes = [2, 16, 130], strides = [1, 1, 1]} : vector<2x18x130xf32> to vector<2x16x130xf32>
    %80 = vector.extract_strided_slice %67 {offsets = [0, 2, 0], sizes = [2, 16, 130], strides = [1, 1, 1]} : vector<2x18x130xf32> to vector<2x16x130xf32>
    %81 = arith.subf %79, %80 : vector<2x16x130xf32>
    %82 = vector.extract_strided_slice %78 {offsets = [0, 0, 0], sizes = [2, 16, 128], strides = [1, 1, 1]} : vector<2x16x130xf32> to vector<2x16x128xf32>
    %83 = vector.extract_strided_slice %78 {offsets = [0, 0, 2], sizes = [2, 16, 128], strides = [1, 1, 1]} : vector<2x16x130xf32> to vector<2x16x128xf32>
    %84 = arith.subf %82, %83 : vector<2x16x128xf32>
    %85 = vector.extract_strided_slice %81 {offsets = [0, 0, 0], sizes = [2, 16, 128], strides = [1, 1, 1]} : vector<2x16x130xf32> to vector<2x16x128xf32>
    %cst_21 = arith.constant 1.000000e+00 : f32
    %86 = vector.broadcast %cst_21 : f32 to vector<2x16x128xf32>
    %87 = arith.mulf %86, %85 : vector<2x16x128xf32>
    %88 = vector.extract_strided_slice %81 {offsets = [0, 0, 1], sizes = [2, 16, 128], strides = [1, 1, 1]} : vector<2x16x130xf32> to vector<2x16x128xf32>
    %cst_22 = arith.constant 2.000000e+00 : f32
    %89 = vector.broadcast %cst_22 : f32 to vector<2x16x128xf32>
    %90 = arith.mulf %89, %88 : vector<2x16x128xf32>
    %91 = arith.addf %87, %90 : vector<2x16x128xf32>
    %92 = vector.extract_strided_slice %81 {offsets = [0, 0, 2], sizes = [2, 16, 128], strides = [1, 1, 1]} : vector<2x16x130xf32> to vector<2x16x128xf32>
    %cst_23 = arith.constant 1.000000e+00 : f32
    %93 = vector.broadcast %cst_23 : f32 to vector<2x16x128xf32>
    %94 = arith.mulf %93, %92 : vector<2x16x128xf32>
    %95 = arith.addf %91, %94 : vector<2x16x128xf32>
    %96 = arith.mulf %84, %84 : vector<2x16x128xf32>
    %97 = arith.mulf %95, %95 : vector<2x16x128xf32>
    %98 = arith.addf %96, %97 : vector<2x16x128xf32>
    %cst_24 = arith.constant 1.000000e+00 : f32
    %99 = vector.broadcast %cst_24 : f32 to vector<2x16x128xf32>
    %100 = arith.addf %98, %99 : vector<2x16x128xf32>
    %cst_25 = arith.constant 1.000000e-24 : f32
    %101 = vector.broadcast %cst_25 : f32 to vector<2x16x128xf32>
    %102 = arith.maximumf %100, %101 : vector<2x16x128xf32>
    %103 = math.rsqrt %102 : vector<2x16x128xf32>
    %104 = arith.mulf %84, %103 : vector<2x16x128xf32>
    %c0_26 = arith.constant 0 : index
    %c0_27 = arith.constant 0 : index
    %c0_28 = arith.constant 0 : index
    %c0_29 = arith.constant 0 : index
    %105 = vector.load %arg3[%c0_26, %c0_27, %c0_28, %c0_29] : memref<2x3x16x128xf32, #tpu.memory_space<vmem>>, vector<2x1x16x128xf32>
    %106 = vector.shape_cast %105 : vector<2x1x16x128xf32> to vector<2x16x128xf32>
    %107 = vector.shape_cast %104 : vector<2x16x128xf32> to vector<2x1x16x128xf32>
    tpu.vector_store %arg3[%c0_26, %c0_27, %c0_28, %c0_29], %107 {strides = array<i32>} : memref<2x3x16x128xf32, #tpu.memory_space<vmem>>, vector<2x1x16x128xf32>,
    %108 = arith.mulf %95, %103 : vector<2x16x128xf32>
    %c0_30 = arith.constant 0 : index
    %c1 = arith.constant 1 : index
    %c0_31 = arith.constant 0 : index
    %c0_32 = arith.constant 0 : index
    %109 = vector.load %arg3[%c0_30, %c1, %c0_31, %c0_32] : memref<2x3x16x128xf32, #tpu.memory_space<vmem>>, vector<2x1x16x128xf32>
    %110 = vector.shape_cast %109 : vector<2x1x16x128xf32> to vector<2x16x128xf32>
    %111 = vector.shape_cast %108 : vector<2x16x128xf32> to vector<2x1x16x128xf32>
    tpu.vector_store %arg3[%c0_30, %c1, %c0_31, %c0_32], %111 {strides = array<i32>} : memref<2x3x16x128xf32, #tpu.memory_space<vmem>>, vector<2x1x16x128xf32>,
    %cst_33 = arith.constant 1.000000e+00 : f32
    %112 = vector.broadcast %cst_33 : f32 to vector<2x16x128xf32>
    %113 = arith.mulf %112, %103 : vector<2x16x128xf32>
    %c0_34 = arith.constant 0 : index
    %c2 = arith.constant 2 : index
    %c0_35 = arith.constant 0 : index
    %c0_36 = arith.constant 0 : index
    %114 = vector.load %arg3[%c0_34, %c2, %c0_35, %c0_36] : memref<2x3x16x128xf32, #tpu.memory_space<vmem>>, vector<2x1x16x128xf32>
    %115 = vector.shape_cast %114 : vector<2x1x16x128xf32> to vector<2x16x128xf32>
    %116 = vector.shape_cast %113 : vector<2x16x128xf32> to vector<2x1x16x128xf32>
    tpu.vector_store %arg3[%c0_34, %c2, %c0_35, %c0_36], %116 {strides = array<i32>} : memref<2x3x16x128xf32, #tpu.memory_space<vmem>>, vector<2x1x16x128xf32>,
    return
  }
  func.func @transform_0(%arg0: i32, %arg1: i32) -> (i32, i32, i32, i32) {
    %c0_i32 = arith.constant 0 : i32
    %c0_i32_0 = arith.constant 0 : i32
    %c0_i32_1 = arith.constant 0 : i32
    return %arg0, %arg1, %c0_i32, %c0_i32_0 : i32, i32, i32, i32
  }
  func.func @transform_1(%arg0: i32, %arg1: i32) -> (i32, i32, i32, i32) {
    %c0_i32 = arith.constant 0 : i32
    %c0_i32_0 = arith.constant 0 : i32
    %c0_i32_1 = arith.constant 0 : i32
    return %arg0, %c0_i32, %arg1, %c0_i32_0 : i32, i32, i32, i32
  }
}

</mosaic_0001>

<llo_original>
// kernel: tpu_custom_call.1
$region0: #{tpu_custom_call.1}
  #allocation0 [shape = 'u32[]', space=smem, size = 0x4, offset = 0x4, fixed_abs, tag = 'smem constant byte address 0x4 - core index']
  #allocation1 [shape = 'u32[144,128]{1,0:T(1,128)}', space=vmem, size = 0x12000, scoped, tag = 'internal scratch']
  %s0 = inlined_call_operand.vmem [shape: f32[2,1,22,256], index: 0, kind: input, shape index: {}]
  %s1 = inlined_call_operand.hbm [shape: f32[2,3,16,128], index: 1, kind: output, shape index: {}]
  %s2 = sld [smem:[#allocation0]]
  $region14: #{tpu_custom_call.1} parent=0
    _
  %s4 = ssub.s32 1, %s2
  %s5 = scalar_select 0, %s4, %s2
  $region1: #{tpu_custom_call.1} parent=0
    #allocation2 [shape = 'u8[49152]{0}', space=vmem, size = 0xc000, scoped, tag = 'output window, operand 0, single buffered']
    #allocation3 [shape = 's32[1]{0}', space=sflag, size = 0x4, scoped, tag = 'scoped memory for tpu_custom_call.1']
    %6 = vsyncpa [#allocation3], 0
    // Predicated region
    $region2: #{tpu_custom_call.1} parent=1 // pred_check
      _
    $region3: #{tpu_custom_call.1} parent=1 // pred_check_branch
      %8 = sbr.rel (0) target = $region5
    $region4: #{tpu_custom_call.1} parent=1 // pred_region
      _
    $region5: #{tpu_custom_call.1} parent=1 // pred_fallthru
      _
    %s9 = smul.u32 0, 16
    %v10 = vld [vmem:[%s0] sm:$0xff]
    %v11 = vld [vmem:[%s0 + $0x8] sm:$0xff]
    %v12 = vld [vmem:[%s0 + $0x10] sm:$0xff]
    %v13 = vld [vmem:[%s0 + $0x18] sm:$0xff]
    %v14 = vld [vmem:[%s0 + $0x20] sm:$0x3f]
    %v15 = vld [vmem:[%s0 + $0x28] sm:$0x3f]
    %v16 = vld [vmem:[%s0 + $0x30] sm:$0xff]
    %v17 = vld [vmem:[%s0 + $0x38] sm:$0xff]
    %v18 = vld [vmem:[%s0 + $0x40] sm:$0xff]
    %v19 = vld [vmem:[%s0 + $0x48] sm:$0xff]
    %v20 = vld [vmem:[%s0 + $0x50] sm:$0x3f]
    %v21 = vld [vmem:[%s0 + $0x58] sm:$0x3f]
    %v22 = vmul.f32 %v10, 0.054488685
    %v23 = vmul.f32 %v11, 0.054488685
    %v24 = vmul.f32 %v12, 0.054488685
    %v25 = vmul.f32 %v13, 0.054488685
    %v26 = vmul.f32 %v14, 0.054488685
    %v27 = vmul.f32 %v15, 0.054488685
    %v28 = vmul.f32 %v16, 0.054488685
    %v29 = vmul.f32 %v17, 0.054488685
    %v30 = vmul.f32 %v18, 0.054488685
    %v31 = vmul.f32 %v19, 0.054488685
    %v32 = vmul.f32 %v20, 0.054488685
    %v33 = vmul.f32 %v21, 0.054488685
    %v34 = vmul.f32 %v10, 0.24420135
    %v35 = vmul.f32 %v11, 0.24420135
    %v36 = vmul.f32 %v12, 0.24420135
    %v37 = vmul.f32 %v13, 0.24420135
    %v38 = vmul.f32 %v14, 0.24420135
    %v39 = vmul.f32 %v15, 0.24420135
    %v40 = vmul.f32 %v16, 0.24420135
    %v41 = vmul.f32 %v17, 0.24420135
    %v42 = vmul.f32 %v18, 0.24420135
    %v43 = vmul.f32 %v19, 0.24420135
    %v44 = vmul.f32 %v20, 0.24420135
    %v45 = vmul.f32 %v21, 0.24420135
    %vm58 = vcmask 1046528
    %v59 = vrot.slane %v34, 1
    %v60 = vrot.slane %v36, 1
    %v61 = vsel %vm58, %v59, %v60
    %v62 = vrot.slane %v35, 1
    %v63 = vrot.slane %v37, 1
    %v64 = vsel %vm58, %v62, %v63
    %v65 = vrot.slane %v38, 1
    %v66 = vsel %vm58, %v60, %v65
    %v67 = vrot.slane %v39, 1
    %v68 = vsel %vm58, %v63, %v67
    %v69 = vrot.slane %v40, 1
    %v70 = vrot.slane %v42, 1
    %v71 = vsel %vm58, %v69, %v70
    %v72 = vrot.slane %v41, 1
    %v73 = vrot.slane %v43, 1
    %v74 = vsel %vm58, %v72, %v73
    %v75 = vrot.slane %v44, 1
    %v76 = vsel %vm58, %v70, %v75
    %v77 = vrot.slane %v45, 1
    %v78 = vsel %vm58, %v73, %v77
    %v91 = vadd.f32 %v22, %v61
    %v92 = vadd.f32 %v23, %v64
    %v93 = vadd.f32 %v24, %v66
    %v94 = vadd.f32 %v25, %v68
    %v95 = vadd.f32 %v26, %v65
    %v96 = vadd.f32 %v27, %v67
    %v97 = vadd.f32 %v28, %v71
    %v98 = vadd.f32 %v29, %v74
    %v99 = vadd.f32 %v30, %v76
    %v100 = vadd.f32 %v31, %v78
    %v101 = vadd.f32 %v32, %v75
    %v102 = vadd.f32 %v33, %v77
    %v103 = vmul.f32 %v10, 0.40261996
    %v104 = vmul.f32 %v11, 0.40261996
    %v105 = vmul.f32 %v12, 0.40261996
    %v106 = vmul.f32 %v13, 0.40261996
    %v107 = vmul.f32 %v14, 0.40261996
    %v108 = vmul.f32 %v15, 0.40261996
    %v109 = vmul.f32 %v16, 0.40261996
    %v110 = vmul.f32 %v17, 0.40261996
    %v111 = vmul.f32 %v18, 0.40261996
    %v112 = vmul.f32 %v19, 0.40261996
    %v113 = vmul.f32 %v20, 0.40261996
    %v114 = vmul.f32 %v21, 0.40261996
    %vm127 = vcmask 1045504
    %v128 = vrot.slane %v103, 2
    %v129 = vrot.slane %v105, 2
    %v130 = vsel %vm127, %v128, %v129
    %v131 = vrot.slane %v104, 2
    %v132 = vrot.slane %v106, 2
    %v133 = vsel %vm127, %v131, %v132
    %v134 = vrot.slane %v107, 2
    %v135 = vsel %vm127, %v129, %v134
    %v136 = vrot.slane %v108, 2
    %v137 = vsel %vm127, %v132, %v136
    %v138 = vrot.slane %v109, 2
    %v139 = vrot.slane %v111, 2
    %v140 = vsel %vm127, %v138, %v139
    %v141 = vrot.slane %v110, 2
    %v142 = vrot.slane %v112, 2
    %v143 = vsel %vm127, %v141, %v142
    %v144 = vrot.slane %v113, 2
    %v145 = vsel %vm127, %v139, %v144
    %v146 = vrot.slane %v114, 2
    %v147 = vsel %vm127, %v142, %v146
    %v160 = vadd.f32 %v91, %v130
    %v161 = vadd.f32 %v92, %v133
    %v162 = vadd.f32 %v93, %v135
    %v163 = vadd.f32 %v94, %v137
    %v164 = vadd.f32 %v95, %v134
    %v165 = vadd.f32 %v96, %v136
    %v166 = vadd.f32 %v97, %v140
    %v167 = vadd.f32 %v98, %v143
    %v168 = vadd.f32 %v99, %v145
    %v169 = vadd.f32 %v100, %v147
    %v170 = vadd.f32 %v101, %v144
    %v171 = vadd.f32 %v102, %v146
    %vm172 = vcmask 1044480
    %v173 = vrot.slane %v34, 3
    %v174 = vrot.slane %v36, 3
    %v175 = vsel %vm172, %v173, %v174
    %v176 = vrot.slane %v35, 3
    %v177 = vrot.slane %v37, 3
    %v178 = vsel %vm172, %v176, %v177
    %v179 = vrot.slane %v38, 3
    %v180 = vsel %vm172, %v174, %v179
    %v181 = vrot.slane %v39, 3
    %v182 = vsel %vm172, %v177, %v181
    %v183 = vrot.slane %v40, 3
    %v184 = vrot.slane %v42, 3
    %v185 = vsel %vm172, %v183, %v184
    %v186 = vrot.slane %v41, 3
    %v187 = vrot.slane %v43, 3
    %v188 = vsel %vm172, %v186, %v187
    %v189 = vrot.slane %v44, 3
    %v190 = vsel %vm172, %v184, %v189
    %v191 = vrot.slane %v45, 3
    %v192 = vsel %vm172, %v187, %v191
    %v205 = vadd.f32 %v160, %v175
    %v206 = vadd.f32 %v161, %v178
    %v207 = vadd.f32 %v162, %v180
    %v208 = vadd.f32 %v163, %v182
    %v209 = vadd.f32 %v164, %v179
    %v210 = vadd.f32 %v165, %v181
    %v211 = vadd.f32 %v166, %v185
    %v212 = vadd.f32 %v167, %v188
    %v213 = vadd.f32 %v168, %v190
    %v214 = vadd.f32 %v169, %v192
    %v215 = vadd.f32 %v170, %v189
    %v216 = vadd.f32 %v171, %v191
    %vm229 = vcmask 1043456
    %v230 = vrot.slane %v22, 4
    %v231 = vrot.slane %v24, 4
    %v232 = vsel %vm229, %v230, %v231
    %v233 = vrot.slane %v23, 4
    %v234 = vrot.slane %v25, 4
    %v235 = vsel %vm229, %v233, %v234
    %v236 = vrot.slane %v26, 4
    %v237 = vsel %vm229, %v231, %v236
    %v238 = vrot.slane %v27, 4
    %v239 = vsel %vm229, %v234, %v238
    %v240 = vrot.slane %v28, 4
    %v241 = vrot.slane %v30, 4
    %v242 = vsel %vm229, %v240, %v241
    %v243 = vrot.slane %v29, 4
    %v244 = vrot.slane %v31, 4
    %v245 = vsel %vm229, %v243, %v244
    %v246 = vrot.slane %v32, 4
    %v247 = vsel %vm229, %v241, %v246
    %v248 = vrot.slane %v33, 4
    %v249 = vsel %vm229, %v244, %v248
    %v262 = vadd.f32 %v205, %v232
    %v263 = vadd.f32 %v206, %v235
    %v264 = vadd.f32 %v207, %v237
    %v265 = vadd.f32 %v208, %v239
    %v266 = vadd.f32 %v209, %v236
    %v267 = vadd.f32 %v210, %v238
    %v268 = vadd.f32 %v211, %v242
    %v269 = vadd.f32 %v212, %v245
    %v270 = vadd.f32 %v213, %v247
    %v271 = vadd.f32 %v214, %v249
    %v272 = vadd.f32 %v215, %v246
    %v273 = vadd.f32 %v216, %v248
    %v274 = vmul.f32 %v262, 0.054488685
    %v275 = vmul.f32 %v263, 0.054488685
    %v276 = vmul.f32 %v264, 0.054488685
    %v277 = vmul.f32 %v265, 0.054488685
    %v278 = vmul.f32 %v266, 0.054488685
    %v279 = vmul.f32 %v267, 0.054488685
    %v280 = vmul.f32 %v268, 0.054488685
    %v281 = vmul.f32 %v269, 0.054488685
    %v282 = vmul.f32 %v270, 0.054488685
    %v283 = vmul.f32 %v271, 0.054488685
    %v284 = vmul.f32 %v272, 0.054488685
    %v285 = vmul.f32 %v273, 0.054488685
    %v286 = vmul.f32 %v262, 0.24420135
    %v287 = vmul.f32 %v263, 0.24420135
    %v288 = vmul.f32 %v264, 0.24420135
    %v289 = vmul.f32 %v265, 0.24420135
    %v290 = vmul.f32 %v266, 0.24420135
    %v291 = vmul.f32 %v267, 0.24420135
    %v292 = vmul.f32 %v268, 0.24420135
    %v293 = vmul.f32 %v269, 0.24420135
    %v294 = vmul.f32 %v270, 0.24420135
    %v295 = vmul.f32 %v271, 0.24420135
    %v296 = vmul.f32 %v272, 0.24420135
    %v297 = vmul.f32 %v273, 0.24420135
    %310 = vrot.lane.b32.xlu0 %v286, 127
    %v311 = vpop.permute.xlu0 %310
    %312 = vrot.lane.b32.xlu0 %v287, 127
    %v313 = vpop.permute.xlu0 %312
    %314 = vrot.lane.b32.xlu0 %v288, 127
    %v315 = vpop.permute.xlu0 %314
    %316 = vrot.lane.b32.xlu0 %v289, 127
    %v317 = vpop.permute.xlu0 %316
    %318 = vrot.lane.b32.xlu0 %v290, 127
    %v319 = vpop.permute.xlu0 %318
    %320 = vrot.lane.b32.xlu0 %v291, 127
    %v321 = vpop.permute.xlu0 %320
    %322 = vrot.lane.b32.xlu0 %v292, 127
    %v323 = vpop.permute.xlu0 %322
    %324 = vrot.lane.b32.xlu0 %v293, 127
    %v325 = vpop.permute.xlu0 %324
    %326 = vrot.lane.b32.xlu0 %v294, 127
    %v327 = vpop.permute.xlu0 %326
    %328 = vrot.lane.b32.xlu0 %v295, 127
    %v329 = vpop.permute.xlu0 %328
    %330 = vrot.lane.b32.xlu0 %v296, 127
    %v331 = vpop.permute.xlu0 %330
    %332 = vrot.lane.b32.xlu0 %v297, 127
    %v333 = vpop.permute.xlu0 %332
    %vm334 = vcmask 1039360
    %v335 = vsel %vm334, %v311, %v313
    %v336 = vsel %vm334, %v315, %v317
    %v337 = vsel %vm334, %v319, %v321
    %v338 = vsel %vm334, %v323, %v325
    %v339 = vsel %vm334, %v327, %v329
    %v340 = vsel %vm334, %v331, %v333
    %v353 = vadd.f32 %v274, %v335
    %v354 = vadd.f32 %v275, %v313
    %v355 = vadd.f32 %v276, %v336
    %v356 = vadd.f32 %v277, %v317
    %v357 = vadd.f32 %v278, %v337
    %v358 = vadd.f32 %v279, %v321
    %v359 = vadd.f32 %v280, %v338
    %v360 = vadd.f32 %v281, %v325
    %v361 = vadd.f32 %v282, %v339
    %v362 = vadd.f32 %v283, %v329
    %v363 = vadd.f32 %v284, %v340
    %v364 = vadd.f32 %v285, %v333
    %v365 = vmul.f32 %v262, 0.40261996
    %v366 = vmul.f32 %v263, 0.40261996
    %v367 = vmul.f32 %v264, 0.40261996
    %v368 = vmul.f32 %v265, 0.40261996
    %v369 = vmul.f32 %v266, 0.40261996
    %v370 = vmul.f32 %v267, 0.40261996
    %v371 = vmul.f32 %v268, 0.40261996
    %v372 = vmul.f32 %v269, 0.40261996
    %v373 = vmul.f32 %v270, 0.40261996
    %v374 = vmul.f32 %v271, 0.40261996
    %v375 = vmul.f32 %v272, 0.40261996
    %v376 = vmul.f32 %v273, 0.40261996
    %389 = vrot.lane.b32.xlu0 %v365, 126
    %v390 = vpop.permute.xlu0 %389
    %391 = vrot.lane.b32.xlu0 %v366, 126
    %v392 = vpop.permute.xlu0 %391
    %393 = vrot.lane.b32.xlu0 %v367, 126
    %v394 = vpop.permute.xlu0 %393
    %395 = vrot.lane.b32.xlu0 %v368, 126
    %v396 = vpop.permute.xlu0 %395
    %397 = vrot.lane.b32.xlu0 %v369, 126
    %v398 = vpop.permute.xlu0 %397
    %399 = vrot.lane.b32.xlu0 %v370, 126
    %v400 = vpop.permute.xlu0 %399
    %401 = vrot.lane.b32.xlu0 %v371, 126
    %v402 = vpop.permute.xlu0 %401
    %403 = vrot.lane.b32.xlu0 %v372, 126
    %v404 = vpop.permute.xlu0 %403
    %405 = vrot.lane.b32.xlu0 %v373, 126
    %v406 = vpop.permute.xlu0 %405
    %407 = vrot.lane.b32.xlu0 %v374, 126
    %v408 = vpop.permute.xlu0 %407
    %409 = vrot.lane.b32.xlu0 %v375, 126
    %v410 = vpop.permute.xlu0 %409
    %411 = vrot.lane.b32.xlu0 %v376, 126
    %v412 = vpop.permute.xlu0 %411
    %vm413 = vcmask 1031168
    %v414 = vsel %vm413, %v390, %v392
    %v415 = vsel %vm413, %v394, %v396
    %v416 = vsel %vm413, %v398, %v400
    %v417 = vsel %vm413, %v402, %v404
    %v418 = vsel %vm413, %v406, %v408
    %v419 = vsel %vm413, %v410, %v412
    %v432 = vadd.f32 %v353, %v414
    %v433 = vadd.f32 %v354, %v392
    %v434 = vadd.f32 %v355, %v415
    %v435 = vadd.f32 %v356, %v396
    %v436 = vadd.f32 %v357, %v416
    %v437 = vadd.f32 %v358, %v400
    %v438 = vadd.f32 %v359, %v417
    %v439 = vadd.f32 %v360, %v404
    %v440 = vadd.f32 %v361, %v418
    %v441 = vadd.f32 %v362, %v408
    %v442 = vadd.f32 %v363, %v419
    %v443 = vadd.f32 %v364, %v412
    %444 = vrot.lane.b32.xlu0 %v286, 125
    %v445 = vpop.permute.xlu0 %444
    %446 = vrot.lane.b32.xlu0 %v287, 125
    %v447 = vpop.permute.xlu0 %446
    %448 = vrot.lane.b32.xlu0 %v288, 125
    %v449 = vpop.permute.xlu0 %448
    %450 = vrot.lane.b32.xlu0 %v289, 125
    %v451 = vpop.permute.xlu0 %450
    %452 = vrot.lane.b32.xlu0 %v290, 125
    %v453 = vpop.permute.xlu0 %452
    %454 = vrot.lane.b32.xlu0 %v291, 125
    %v455 = vpop.permute.xlu0 %454
    %456 = vrot.lane.b32.xlu0 %v292, 125
    %v457 = vpop.permute.xlu0 %456
    %458 = vrot.lane.b32.xlu0 %v293, 125
    %v459 = vpop.permute.xlu0 %458
    %460 = vrot.lane.b32.xlu0 %v294, 125
    %v461 = vpop.permute.xlu0 %460
    %462 = vrot.lane.b32.xlu0 %v295, 125
    %v463 = vpop.permute.xlu0 %462
    %464 = vrot.lane.b32.xlu0 %v296, 125
    %v465 = vpop.permute.xlu0 %464
    %466 = vrot.lane.b32.xlu0 %v297, 125
    %v467 = vpop.permute.xlu0 %466
    %vm468 = vcmask 1022976
    %v469 = vsel %vm468, %v445, %v447
    %v470 = vsel %vm468, %v449, %v451
    %v471 = vsel %vm468, %v453, %v455
    %v472 = vsel %vm468, %v457, %v459
    %v473 = vsel %vm468, %v461, %v463
    %v474 = vsel %vm468, %v465, %v467
    %v487 = vadd.f32 %v432, %v469
    %v488 = vadd.f32 %v433, %v447
    %v489 = vadd.f32 %v434, %v470
    %v490 = vadd.f32 %v435, %v451
    %v491 = vadd.f32 %v436, %v471
    %v492 = vadd.f32 %v437, %v455
    %v493 = vadd.f32 %v438, %v472
    %v494 = vadd.f32 %v439, %v459
    %v495 = vadd.f32 %v440, %v473
    %v496 = vadd.f32 %v441, %v463
    %v497 = vadd.f32 %v442, %v474
    %v498 = vadd.f32 %v443, %v467
    %511 = vrot.lane.b32.xlu0 %v274, 124
    %v512 = vpop.permute.xlu0 %511
    %513 = vrot.lane.b32.xlu0 %v275, 124
    %v514 = vpop.permute.xlu0 %513
    %515 = vrot.lane.b32.xlu0 %v276, 124
    %v516 = vpop.permute.xlu0 %515
    %517 = vrot.lane.b32.xlu0 %v277, 124
    %v518 = vpop.permute.xlu0 %517
    %519 = vrot.lane.b32.xlu0 %v278, 124
    %v520 = vpop.permute.xlu0 %519
    %521 = vrot.lane.b32.xlu0 %v279, 124
    %v522 = vpop.permute.xlu0 %521
    %523 = vrot.lane.b32.xlu0 %v280, 124
    %v524 = vpop.permute.xlu0 %523
    %525 = vrot.lane.b32.xlu0 %v281, 124
    %v526 = vpop.permute.xlu0 %525
    %527 = vrot.lane.b32.xlu0 %v282, 124
    %v528 = vpop.permute.xlu0 %527
    %529 = vrot.lane.b32.xlu0 %v283, 124
    %v530 = vpop.permute.xlu0 %529
    %531 = vrot.lane.b32.xlu0 %v284, 124
    %v532 = vpop.permute.xlu0 %531
    %533 = vrot.lane.b32.xlu0 %v285, 124
    %v534 = vpop.permute.xlu0 %533
    %vm535 = vcmask 1014784
    %v536 = vsel %vm535, %v512, %v514
    %v537 = vsel %vm535, %v516, %v518
    %v538 = vsel %vm535, %v520, %v522
    %v539 = vsel %vm535, %v524, %v526
    %v540 = vsel %vm535, %v528, %v530
    %v541 = vsel %vm535, %v532, %v534
    %v554 = vadd.f32 %v487, %v536
    %v555 = vadd.f32 %v488, %v514
    %v556 = vadd.f32 %v489, %v537
    %v557 = vadd.f32 %v490, %v518
    %v558 = vadd.f32 %v491, %v538
    %v559 = vadd.f32 %v492, %v522
    %v560 = vadd.f32 %v493, %v539
    %v561 = vadd.f32 %v494, %v526
    %v562 = vadd.f32 %v495, %v540
    %v563 = vadd.f32 %v496, %v530
    %v564 = vadd.f32 %v497, %v541
    %v565 = vadd.f32 %v498, %v534
    %v566 = vsub.f32 1.0, %v554
    %v567 = vsub.f32 1.0, %v555
    %v568 = vsub.f32 1.0, %v556
    %v569 = vsub.f32 1.0, %v557
    %v570 = vsub.f32 1.0, %v558
    %v571 = vsub.f32 1.0, %v559
    %v572 = vsub.f32 1.0, %v560
    %v573 = vsub.f32 1.0, %v561
    %v574 = vsub.f32 1.0, %v562
    %v575 = vsub.f32 1.0, %v563
    %v576 = vsub.f32 1.0, %v564
    %v577 = vsub.f32 1.0, %v565
    %v578 = vlaneseq
    %v579 = vshrl.u32 %v578, 7
    %v580 = vadd.s32 %v579, 8
    %v581 = vadd.s32 %v579, 16
    %s582 = ssub.s32 %s9, 1
    %v583 = vstv %s582
    %v584 = vadd.s32 %v579, %v583
    %v585 = vadd.s32 %v580, %v583
    %v586 = vadd.s32 %v581, %v583
    %v587 = vlaneseq
    %v588 = vand.u32 %v587, 127
    %v589 = vadd.s32 %v588, 128
    %v590 = vsub.s32 %v588, 1
    %v591 = vsub.s32 %v589, 1
    %vm592 = vcmp.ge.s32.totalorder %v584, 0
    %vm593 = vcmp.ge.s32.totalorder %v585, 0
    %vm594 = vcmp.ge.s32.totalorder %v586, 0
    %vm595 = vcmp.lt.s32.totalorder %v584, 16
    %vm596 = vcmp.lt.s32.totalorder %v585, 16
    %vm597 = vcmp.lt.s32.totalorder %v586, 16
    %vm598 = vmand %vm592, %vm595
    %vm599 = vmand %vm593, %vm596
    %vm600 = vmand %vm594, %vm597
    %vm601 = vcmp.ge.s32.totalorder %v590, 0
    %vm602 = vcmp.ge.s32.totalorder %v591, 0
    %vm603 = vcmp.lt.s32.totalorder %v590, 16
    %vm604 = vcmp.lt.s32.totalorder %v591, 16
    %vm605 = vmand %vm601, %vm603
    %vm606 = vmand %vm602, %vm604
    %v607 = vsel %vm598, 1, 0
    %v608 = vsel %vm599, 1, 0
    %v609 = vsel %vm600, 1, 0
    %vm610 = vcmp.eq.s32.totalorder %v607, 1
    %vm611 = vcmp.eq.s32.totalorder %v608, 1
    %vm612 = vcmp.eq.s32.totalorder %v609, 1
    %v613 = vsel %vm605, 1, 0
    %v614 = vsel %vm606, 1, 0
    %vm615 = vcmp.eq.s32.totalorder %v613, 1
    %vm616 = vcmp.eq.s32.totalorder %v614, 1
    %vm617 = vmand %vm610, %vm615
    %vm618 = vmand %vm610, %vm616
    %vm619 = vmand %vm611, %vm615
    %vm620 = vmand %vm611, %vm616
    %vm621 = vmand %vm612, %vm615
    %vm622 = vmand %vm612, %vm616
    %v623 = vsel %vm617, 1, 0
    %v624 = vsel %vm618, 1, 0
    %v625 = vsel %vm619, 1, 0
    %v626 = vsel %vm620, 1, 0
    %v627 = vsel %vm621, 1, 0
    %v628 = vsel %vm622, 1, 0
    %vm629 = vcmp.eq.s32.totalorder %v623, 1
    %vm630 = vcmp.eq.s32.totalorder %v624, 1
    %vm631 = vcmp.eq.s32.totalorder %v625, 1
    %vm632 = vcmp.eq.s32.totalorder %v626, 1
    %vm633 = vcmp.eq.s32.totalorder %v627, 1
    %vm634 = vcmp.eq.s32.totalorder %v628, 1
    %v635 = vsel %vm629, %v566, 0.0
    %v636 = vsel %vm630, %v567, 0.0
    %v637 = vsel %vm631, %v568, 0.0
    %v638 = vsel %vm632, %v569, 0.0
    %v639 = vsel %vm633, %v570, 0.0
    %v640 = vsel %vm634, %v571, 0.0
    %v641 = vsel %vm629, %v572, 0.0
    %v642 = vsel %vm630, %v573, 0.0
    %v643 = vsel %vm631, %v574, 0.0
    %v644 = vsel %vm632, %v575, 0.0
    %v645 = vsel %vm633, %v576, 0.0
    %v646 = vsel %vm634, %v577, 0.0
    %v647 = vmul.f32 %v635, 2.0
    %v648 = vmul.f32 %v636, 2.0
    %v649 = vmul.f32 %v637, 2.0
    %v650 = vmul.f32 %v638, 2.0
    %v651 = vmul.f32 %v639, 2.0
    %v652 = vmul.f32 %v640, 2.0
    %v653 = vmul.f32 %v641, 2.0
    %v654 = vmul.f32 %v642, 2.0
    %v655 = vmul.f32 %v643, 2.0
    %v656 = vmul.f32 %v644, 2.0
    %v657 = vmul.f32 %v645, 2.0
    %v658 = vmul.f32 %v646, 2.0
    %v671 = vrot.slane %v647, 1
    %v672 = vrot.slane %v649, 1
    %v673 = vsel %vm58, %v671, %v672
    %v674 = vrot.slane %v648, 1
    %v675 = vrot.slane %v650, 1
    %v676 = vsel %vm58, %v674, %v675
    %v677 = vrot.slane %v651, 1
    %v678 = vsel %vm58, %v672, %v677
    %v679 = vrot.slane %v652, 1
    %v680 = vsel %vm58, %v675, %v679
    %v681 = vrot.slane %v653, 1
    %v682 = vrot.slane %v655, 1
    %v683 = vsel %vm58, %v681, %v682
    %v684 = vrot.slane %v654, 1
    %v685 = vrot.slane %v656, 1
    %v686 = vsel %vm58, %v684, %v685
    %v687 = vrot.slane %v657, 1
    %v688 = vsel %vm58, %v682, %v687
    %v689 = vrot.slane %v658, 1
    %v690 = vsel %vm58, %v685, %v689
    %v699 = vadd.f32 %v635, %v673
    %v700 = vadd.f32 %v636, %v676
    %v701 = vadd.f32 %v637, %v678
    %v702 = vadd.f32 %v638, %v680
    %v703 = vadd.f32 %v641, %v683
    %v704 = vadd.f32 %v642, %v686
    %v705 = vadd.f32 %v643, %v688
    %v706 = vadd.f32 %v644, %v690
    %v719 = vrot.slane %v635, 2
    %v720 = vrot.slane %v637, 2
    %v721 = vsel %vm127, %v719, %v720
    %v722 = vrot.slane %v636, 2
    %v723 = vrot.slane %v638, 2
    %v724 = vsel %vm127, %v722, %v723
    %v725 = vrot.slane %v639, 2
    %v726 = vsel %vm127, %v720, %v725
    %v727 = vrot.slane %v640, 2
    %v728 = vsel %vm127, %v723, %v727
    %v729 = vrot.slane %v641, 2
    %v730 = vrot.slane %v643, 2
    %v731 = vsel %vm127, %v729, %v730
    %v732 = vrot.slane %v642, 2
    %v733 = vrot.slane %v644, 2
    %v734 = vsel %vm127, %v732, %v733
    %v735 = vrot.slane %v645, 2
    %v736 = vsel %vm127, %v730, %v735
    %v737 = vrot.slane %v646, 2
    %v738 = vsel %vm127, %v733, %v737
    %v747 = vadd.f32 %v699, %v721
    %v748 = vadd.f32 %v700, %v724
    %v749 = vadd.f32 %v701, %v726
    %v750 = vadd.f32 %v702, %v728
    %v751 = vadd.f32 %v703, %v731
    %v752 = vadd.f32 %v704, %v734
    %v753 = vadd.f32 %v705, %v736
    %v754 = vadd.f32 %v706, %v738
    %v755 = vsub.f32 %v635, %v721
    %v756 = vsub.f32 %v636, %v724
    %v757 = vsub.f32 %v637, %v726
    %v758 = vsub.f32 %v638, %v728
    %v759 = vsub.f32 %v641, %v731
    %v760 = vsub.f32 %v642, %v734
    %v761 = vsub.f32 %v643, %v736
    %v762 = vsub.f32 %v644, %v738
    %771 = vrot.lane.b32.xlu0 %v747, 126
    %v772 = vpop.permute.xlu0 %771
    %773 = vrot.lane.b32.xlu0 %v748, 126
    %v774 = vpop.permute.xlu0 %773
    %775 = vrot.lane.b32.xlu0 %v749, 126
    %v776 = vpop.permute.xlu0 %775
    %777 = vrot.lane.b32.xlu0 %v750, 126
    %v778 = vpop.permute.xlu0 %777
    %779 = vrot.lane.b32.xlu0 %v751, 126
    %v780 = vpop.permute.xlu0 %779
    %781 = vrot.lane.b32.xlu0 %v752, 126
    %v782 = vpop.permute.xlu0 %781
    %783 = vrot.lane.b32.xlu0 %v753, 126
    %v784 = vpop.permute.xlu0 %783
    %785 = vrot.lane.b32.xlu0 %v754, 126
    %v786 = vpop.permute.xlu0 %785
    %v787 = vsel %vm413, %v772, %v774
    %v788 = vsel %vm413, %v776, %v778
    %v789 = vsel %vm413, %v780, %v782
    %v790 = vsel %vm413, %v784, %v786
    %v795 = vsub.f32 %v747, %v787
    %v796 = vsub.f32 %v749, %v788
    %v797 = vsub.f32 %v751, %v789
    %v798 = vsub.f32 %v753, %v790
    %v799 = vmul.f32 %v755, 2.0
    %v800 = vmul.f32 %v756, 2.0
    %v801 = vmul.f32 %v757, 2.0
    %v802 = vmul.f32 %v758, 2.0
    %v803 = vmul.f32 %v759, 2.0
    %v804 = vmul.f32 %v760, 2.0
    %v805 = vmul.f32 %v761, 2.0
    %v806 = vmul.f32 %v762, 2.0
    %815 = vrot.lane.b32.xlu0 %v799, 127
    %v816 = vpop.permute.xlu0 %815
    %817 = vrot.lane.b32.xlu0 %v800, 127
    %v818 = vpop.permute.xlu0 %817
    %819 = vrot.lane.b32.xlu0 %v801, 127
    %v820 = vpop.permute.xlu0 %819
    %821 = vrot.lane.b32.xlu0 %v802, 127
    %v822 = vpop.permute.xlu0 %821
    %823 = vrot.lane.b32.xlu0 %v803, 127
    %v824 = vpop.permute.xlu0 %823
    %825 = vrot.lane.b32.xlu0 %v804, 127
    %v826 = vpop.permute.xlu0 %825
    %827 = vrot.lane.b32.xlu0 %v805, 127
    %v828 = vpop.permute.xlu0 %827
    %829 = vrot.lane.b32.xlu0 %v806, 127
    %v830 = vpop.permute.xlu0 %829
    %v831 = vsel %vm334, %v816, %v818
    %v832 = vsel %vm334, %v820, %v822
    %v833 = vsel %vm334, %v824, %v826
    %v834 = vsel %vm334, %v828, %v830
    %v839 = vadd.f32 %v755, %v831
    %v840 = vadd.f32 %v757, %v832
    %v841 = vadd.f32 %v759, %v833
    %v842 = vadd.f32 %v761, %v834
    %851 = vrot.lane.b32.xlu0 %v755, 126
    %v852 = vpop.permute.xlu0 %851
    %853 = vrot.lane.b32.xlu0 %v756, 126
    %v854 = vpop.permute.xlu0 %853
    %855 = vrot.lane.b32.xlu0 %v757, 126
    %v856 = vpop.permute.xlu0 %855
    %857 = vrot.lane.b32.xlu0 %v758, 126
    %v858 = vpop.permute.xlu0 %857
    %859 = vrot.lane.b32.xlu0 %v759, 126
    %v860 = vpop.permute.xlu0 %859
    %861 = vrot.lane.b32.xlu0 %v760, 126
    %v862 = vpop.permute.xlu0 %861
    %863 = vrot.lane.b32.xlu0 %v761, 126
    %v864 = vpop.permute.xlu0 %863
    %865 = vrot.lane.b32.xlu0 %v762, 126
    %v866 = vpop.permute.xlu0 %865
    %v867 = vsel %vm413, %v852, %v854
    %v868 = vsel %vm413, %v856, %v858
    %v869 = vsel %vm413, %v860, %v862
    %v870 = vsel %vm413, %v864, %v866
    %v875 = vadd.f32 %v839, %v867
    %v876 = vadd.f32 %v840, %v868
    %v877 = vadd.f32 %v841, %v869
    %v878 = vadd.f32 %v842, %v870
    %v879 = vmul.f32 %v795, %v795
    %v880 = vmul.f32 %v796, %v796
    %v881 = vmul.f32 %v797, %v797
    %v882 = vmul.f32 %v798, %v798
    %v883 = vmul.f32 %v875, %v875
    %v884 = vmul.f32 %v876, %v876
    %v885 = vmul.f32 %v877, %v877
    %v886 = vmul.f32 %v878, %v878
    %v887 = vadd.f32 %v879, %v883
    %v888 = vadd.f32 %v880, %v884
    %v889 = vadd.f32 %v881, %v885
    %v890 = vadd.f32 %v882, %v886
    %v891 = vadd.f32 %v887, 1.0
    %v892 = vadd.f32 %v888, 1.0
    %v893 = vadd.f32 %v889, 1.0
    %v894 = vadd.f32 %v890, 1.0
    %v895 = vmax.f32 %v891, 1e-24
    %v896 = vmax.f32 %v892, 1e-24
    %v897 = vmax.f32 %v893, 1e-24
    %v898 = vmax.f32 %v894, 1e-24
    %v899 = vrsqrt.pop %v895
    %v900 = vrsqrt.pop %v896
    %v901 = vrsqrt.pop %v897
    %v902 = vrsqrt.pop %v898
    %v903 = vmul.f32 %v795, %v899
    %v904 = vmul.f32 %v796, %v900
    %v905 = vmul.f32 %v797, %v901
    %v906 = vmul.f32 %v798, %v902
    %907 = vst [vmem:[#allocation2] sm:$0xff] %v903
    %908 = vst [vmem:[#allocation2 + $0x8] sm:$0xff] %v904
    %909 = vst [vmem:[#allocation2 + $0x30] sm:$0xff] %v905
    %910 = vst [vmem:[#allocation2 + $0x38] sm:$0xff] %v906
    %v911 = vmul.f32 %v875, %v899
    %v912 = vmul.f32 %v876, %v900
    %v913 = vmul.f32 %v877, %v901
    %v914 = vmul.f32 %v878, %v902
    %s915 = scalar_lea.vmem [#allocation2], 16
    %916 = vst [vmem:[%s915] sm:$0xff] %v911
    %917 = vst [vmem:[%s915 + $0x8] sm:$0xff] %v912
    %918 = vst [vmem:[%s915 + $0x30] sm:$0xff] %v913
    %919 = vst [vmem:[%s915 + $0x38] sm:$0xff] %v914
    %s920 = scalar_lea.vmem [#allocation2], 32
    %921 = vst [vmem:[%s920] sm:$0xff] %v899
    %922 = vst [vmem:[%s920 + $0x8] sm:$0xff] %v900
    %923 = vst [vmem:[%s920 + $0x30] sm:$0xff] %v901
    %924 = vst [vmem:[%s920 + $0x38] sm:$0xff] %v902
    // Predicated region
    $region6: #{tpu_custom_call.1} parent=1 // pred_check
      _
    $region7: #{tpu_custom_call.1} parent=1 // pred_check_branch
      %926 = sbr.rel (0) target = $region9
    $region8: #{tpu_custom_call.1} parent=1 // pred_region
      %s928 = ssub.s32 1536, 1536
      %929 = vsyncadd [#allocation3], %s928
      %s930 = sshll.u32 [#allocation2], 4
      %s931 = int_to_ptr.vmem [resolvable:$true] %s930
      %936 = dma.vmem_to_hbm [thread:$0]  %s931, 1536, %s1, [#allocation3], 128, 128, 8
    $region9: #{tpu_custom_call.1} parent=1 // pred_fallthru
      _
    // Predicated region
    $region10: #{tpu_custom_call.1} parent=1 // pred_check
      _
    $region11: #{tpu_custom_call.1} parent=1 // pred_check_branch
      %938 = sbr.rel (0) target = $region13
    $region12: #{tpu_custom_call.1} parent=1 // pred_region
      %939 = dma.done [#allocation3], 1536
    $region13: #{tpu_custom_call.1} parent=1 // pred_fallthru
      _
    %940 = vsyncpa [#allocation3], 1

</llo_original>
